<compile_context>
chip_gen: v7x
topology: tpu7x:2x2x1
jax: 0.10.0
libtpu: 0.0.40
codegen_flags: <defaults>
</compile_context>

<pallas_src>
import functools

import jax
import jax.numpy as jnp
from jax.experimental import pallas as pl
from jax.experimental.pallas import tpu as pltpu

EPS = 1e-5  # nn.BatchNorm1d default


def basic_block_kernel(x_ref, w_ref, gamma_ref, beta_ref, a_ref, o_ref, *, L):
    # x_ref:     (C, N*L) f32   -- activations, also the residual (single input)
    # w_ref:     (C_out, 3*C_in) bf16, tap-major blocks [w[:,:,0] | w[:,:,1] | w[:,:,2]]
    # gamma/beta:(C_out, 1) f32
    # a_ref:     (1,) f32 in SMEM -- PReLU slope
    x = x_ref[...]                                   # (C, NL) f32
    C, NL = x.shape

    # --- k=3, padding=1 taps on the flattened lane axis -------------------
    # XLU lane rotation + per-sample boundary masks (zero padding at l==0 / l==L-1).
    lane = jax.lax.broadcasted_iota(jnp.int32, (C, NL), 1)
    pos = lane % L                                   # position within each sample
    x_m1 = jnp.where(pos == 0, 0.0, pltpu.roll(x, 1, 1))         # x[..., l-1]
    x_p1 = jnp.where(pos == L - 1, 0.0, pltpu.roll(x, NL - 1, 1))  # x[..., l+1]

    # --- Conv1d as a single K=3*C_in contraction, N*L on the MXU lane axis ---
    x3 = jnp.concatenate([x_m1, x, x_p1], axis=0).astype(jnp.bfloat16)   # (3C, NL)
    y = jnp.dot(w_ref[...], x3, preferred_element_type=jnp.float32)      # (C_out, NL) f32

    # --- BatchNorm1d, training-mode batch stats (two-pass, f32) -----------
    inv_m = 1.0 / NL
    mean = jnp.sum(y, axis=1, keepdims=True) * inv_m                     # (C_out, 1)
    centered = y - mean
    var = jnp.sum(centered * centered, axis=1, keepdims=True) * inv_m    # biased var
    scale = gamma_ref[...] * jax.lax.rsqrt(var + EPS)                    # (C_out, 1)
    shift = beta_ref[...] - mean * scale                                 # (C_out, 1)

    # --- normalize + residual add + PReLU (VPU, f32), lane-dense store ----
    out = y * scale + shift + x
    a = a_ref[0]                                                         # SMEM scalar
    o_ref[...] = jnp.where(out >= 0.0, out, a * out)


def basic_block_forward(x_ncl, w_torch, gamma, beta, prelu_a):
    """x_ncl: (N, C, L) f32 (PyTorch NCL). w_torch: (C_out, C_in, 3) Conv1d weight."""
    N, C, L = x_ncl.shape
    NL = N * L

    # Fold the batch into the lane axis: (N, C, L) -> (C, N*L).  NL is a
    # multiple of 128 -> lane-dense loads/stores, one lane reduce for BN stats.
    x2d = jnp.transpose(x_ncl, (1, 0, 2)).reshape(C, NL).astype(jnp.float32)

    # im2col-style weight (C_out, 3*C_in), tap-major blocks matching the
    # in-kernel concat order; bf16 MXU inputs (f32 accumulation in-kernel).
    w_flat = jnp.concatenate(
        [w_torch[:, :, 0], w_torch[:, :, 1], w_torch[:, :, 2]],
        axis=1).astype(jnp.bfloat16)
    gamma2 = gamma.reshape(C, 1).astype(jnp.float32)
    beta2 = beta.reshape(C, 1).astype(jnp.float32)

    out2d = pl.pallas_call(
        functools.partial(basic_block_kernel, L=L),
        out_shape=jax.ShapeDtypeStruct((C, NL), jnp.float32),
        in_specs=[
            pl.BlockSpec(memory_space=pltpu.MemorySpace.VMEM),   # x (also residual)
            pl.BlockSpec(memory_space=pltpu.MemorySpace.VMEM),   # conv2 weight (im2col, bf16)
            pl.BlockSpec(memory_space=pltpu.MemorySpace.VMEM),   # BN gamma
            pl.BlockSpec(memory_space=pltpu.MemorySpace.VMEM),   # BN beta
            pl.BlockSpec(memory_space=pltpu.MemorySpace.SMEM),   # PReLU slope scalar
        ],
        out_specs=pl.BlockSpec(memory_space=pltpu.MemorySpace.VMEM),
    )(x2d, w_flat, gamma2, beta2, prelu_a)

    # Back to PyTorch NCL layout.
    return out2d.reshape(C, N, L).transpose(1, 0, 2)


def _reference_forward(x, w, gamma, beta, a, matmul_dtype=jnp.float32):
    """Pure-jnp reference: PReLU(BN_train(Conv1d_k3_p1(x)) + x).

    matmul_dtype lets us match the kernel's bf16-input / f32-accumulate matmul.
    """
    N, C, L = x.shape
    xpad = jnp.pad(x, ((0, 0), (0, 0), (1, 1)))
    taps = [xpad[:, :, k:k + L].astype(matmul_dtype) for k in range(3)]
    wd = w.astype(matmul_dtype)
    y = sum(
        jnp.einsum('oi,nil->nol', wd[:, :, k], taps[k],
                   preferred_element_type=jnp.float32)
        for k in range(3))
    mean = jnp.mean(y, axis=(0, 2), keepdims=True)
    var = jnp.mean((y - mean) ** 2, axis=(0, 2), keepdims=True)
    yhat = (y - mean) * jax.lax.rsqrt(var + EPS)
    yhat = yhat * gamma.reshape(1, C, 1) + beta.reshape(1, C, 1)
    out = yhat + x
    return jnp.where(out >= 0.0, out, a[0] * out)


if __name__ == "__main__":
    # BasicBlock(inplanes=planes=8, stride=1, downsample=None) — required for the
    # reference forward (conv2 applied directly to x + residual add) to typecheck.
    N, C, L = 2, 8, 128
    key = jax.random.PRNGKey(0)
    kx, kw = jax.random.split(key)

    x = jax.random.normal(kx, (N, C, L), dtype=jnp.float32)
    w_torch = 0.1 * jax.random.normal(kw, (C, C, 3), dtype=jnp.float32)  # (C_out,C_in,K)
    gamma = jnp.ones((C,), jnp.float32)           # BN weight init = 1
    beta = jnp.zeros((C,), jnp.float32)           # BN bias   init = 0
    prelu_a = jnp.full((1,), 0.25, jnp.float32)   # nn.PReLU default slope

    out = basic_block_forward(x, w_torch, gamma, beta, prelu_a)
    jax.block_until_ready(out)
    assert out.shape == (N, C, L) and out.dtype == jnp.float32

    # Primary check: against a reference that uses the same bf16 matmul inputs
    # with f32 accumulation (isolates kernel correctness from the deliberate
    # bf16 accuracy tradeoff).
    ref_bf16 = _reference_forward(x, w_torch, gamma, beta, prelu_a, jnp.bfloat16)
    err_bf16 = float(jnp.max(jnp.abs(out - ref_bf16)))
    assert err_bf16 < 2e-2, f"kernel mismatch vs bf16-matmul reference, max_err={err_bf16}"

    # Sanity check: the bf16 MXU-input tradeoff stays small vs the pure-f32 reference.
    ref_f32 = _reference_forward(x, w_torch, gamma, beta, prelu_a, jnp.float32)
    err_f32 = float(jnp.max(jnp.abs(out - ref_f32)))
    assert err_f32 < 1e-1, f"bf16 tradeoff too large vs f32 reference, max_err={err_f32}"

    print("KERNEL_OK")
</pallas_src>

<mosaic_0001>
module attributes {stable_mosaic.version = 11 : i64} {
  func.func @basic_block_kernel(%arg0: memref<8x256xf32, #tpu.memory_space<vmem>>, %arg1: memref<8x24xbf16, #tpu.memory_space<vmem>>, %arg2: memref<8x1xf32, #tpu.memory_space<vmem>>, %arg3: memref<8x1xf32, #tpu.memory_space<vmem>>, %arg4: memref<1xf32, #tpu.memory_space<smem>>, %arg5: memref<8x256xf32, #tpu.memory_space<vmem>>) attributes {dimension_semantics = [], scalar_prefetch = 0 : i64, scratch_operands = 0 : i64, tpu.core_type = #tpu.core_type<tc>} {
    %c0 = arith.constant 0 : index
    %c0_0 = arith.constant 0 : index
    %0 = vector.load %arg0[%c0, %c0_0] : memref<8x256xf32, #tpu.memory_space<vmem>>, vector<8x256xf32>
    %1 = tpu.iota {dimensions = array<i32: 1>} : vector<8x256xi32>
    %c128_i32 = arith.constant 128 : i32
    %c0_i32 = arith.constant 0 : i32
    %2 = arith.cmpi eq, %c128_i32, %c0_i32 : i32
    %c1_i32 = arith.constant 1 : i32
    %3 = arith.select %2, %c1_i32, %c128_i32 : i32
    %4 = vector.broadcast %3 : i32 to vector<8x256xi32>
    %5 = arith.remsi %1, %4 : vector<8x256xi32>
    %c0_i32_1 = arith.constant 0 : i32
    %6 = vector.broadcast %c0_i32_1 : i32 to vector<8x256xi32>
    %7 = arith.cmpi ne, %5, %6 : vector<8x256xi32>
    %c0_i32_2 = arith.constant 0 : i32
    %8 = vector.broadcast %c0_i32_2 : i32 to vector<8x256xi32>
    %9 = arith.cmpi slt, %5, %8 : vector<8x256xi32>
    %c0_i32_3 = arith.constant 0 : i32
    %10 = arith.cmpi slt, %3, %c0_i32_3 : i32
    %11 = vector.broadcast %10 : i1 to vector<8x256xi1>
    %12 = vector.broadcast %11 : vector<8x256xi1> to vector<8x256xi1>
    %13 = arith.xori %9, %12 : vector<8x256xi1>
    %14 = arith.andi %13, %7 : vector<8x256xi1>
    %15 = vector.broadcast %3 : i32 to vector<8x256xi32>
    %16 = arith.addi %5, %15 : vector<8x256xi32>
    %17 = arith.select %14, %16, %5 : vector<8x256xi1>, vector<8x256xi32>
    %c0_i32_4 = arith.constant 0 : i32
    %18 = vector.broadcast %c0_i32_4 : i32 to vector<8x256xi32>
    %19 = arith.cmpi eq, %17, %18 : vector<8x256xi32>
    %c1_i32_5 = arith.constant 1 : i32
    %20 = tpu.dynamic_rotate %0 by %c1_i32_5 dim 1 : vector<8x256xf32>, i32 -> vector<8x256xf32>
    %cst = arith.constant 0.000000e+00 : f32
    %21 = vector.broadcast %cst : f32 to vector<8x256xf32>
    %22 = arith.select %19, %21, %20 : vector<8x256xi1>, vector<8x256xf32>
    %c127_i32 = arith.constant 127 : i32
    %23 = vector.broadcast %c127_i32 : i32 to vector<8x256xi32>
    %24 = arith.cmpi eq, %17, %23 : vector<8x256xi32>
    %c255_i32 = arith.constant 255 : i32
    %25 = tpu.dynamic_rotate %0 by %c255_i32 dim 1 : vector<8x256xf32>, i32 -> vector<8x256xf32>
    %cst_6 = arith.constant 0.000000e+00 : f32
    %26 = vector.broadcast %cst_6 : f32 to vector<8x256xf32>
    %27 = arith.select %24, %26, %25 : vector<8x256xi1>, vector<8x256xf32>
    %28 = tpu.concatenate %22, %0, %27 in 0 : vector<8x256xf32>, vector<8x256xf32>, vector<8x256xf32> -> vector<24x256xf32>
    %29 = arith.truncf %28 : vector<24x256xf32> to vector<24x256xbf16>
    %c0_7 = arith.constant 0 : index
    %c0_8 = arith.constant 0 : index
    %30 = vector.load %arg1[%c0_7, %c0_8] : memref<8x24xbf16, #tpu.memory_space<vmem>>, vector<8x24xbf16>
    %cst_9 = arith.constant dense<0.000000e+00> : vector<8x256xf32>
    %31 = tpu.matmul %30, %29, %cst_9 {dimension_numbers = #tpu.dot_dimension_numbers<[1], [0], [0], [1], [0, 0, 1, 1], [], []>} : vector<8x24xbf16>, vector<24x256xbf16>, vector<8x256xf32> -> vector<8x256xf32>
    %cst_10 = arith.constant dense<0.000000e+00> : vector<8xf32>
    %32 = vector.multi_reduction <add>, %31, %cst_10 [1] : vector<8x256xf32> to vector<8xf32>
    %33 = vector.shape_cast %32 : vector<8xf32> to vector<8x1xf32>
    %cst_11 = arith.constant 3.906250e-03 : f32
    %34 = vector.broadcast %cst_11 : f32 to vector<8x1xf32>
    %35 = arith.mulf %33, %34 : vector<8x1xf32>
    %36 = vector.broadcast %35 : vector<8x1xf32> to vector<8x256xf32>
    %37 = arith.subf %31, %36 : vector<8x256xf32>
    %38 = arith.mulf %37, %37 : vector<8x256xf32>
    %cst_12 = arith.constant dense<0.000000e+00> : vector<8xf32>
    %39 = vector.multi_reduction <add>, %38, %cst_12 [1] : vector<8x256xf32> to vector<8xf32>
    %40 = vector.shape_cast %39 : vector<8xf32> to vector<8x1xf32>
    %cst_13 = arith.constant 3.906250e-03 : f32
    %41 = vector.broadcast %cst_13 : f32 to vector<8x1xf32>
    %42 = arith.mulf %40, %41 : vector<8x1xf32>
    %c0_14 = arith.constant 0 : index
    %c0_15 = arith.constant 0 : index
    %43 = vector.load %arg2[%c0_14, %c0_15] : memref<8x1xf32, #tpu.memory_space<vmem>>, vector<8x1xf32>
    %cst_16 = arith.constant 9.99999974E-6 : f32
    %44 = vector.broadcast %cst_16 : f32 to vector<8x1xf32>
    %45 = arith.addf %42, %44 : vector<8x1xf32>
    %46 = math.rsqrt %45 : vector<8x1xf32>
    %47 = arith.mulf %43, %46 : vector<8x1xf32>
    %c0_17 = arith.constant 0 : index
    %c0_18 = arith.constant 0 : index
    %48 = vector.load %arg3[%c0_17, %c0_18] : memref<8x1xf32, #tpu.memory_space<vmem>>, vector<8x1xf32>
    %49 = arith.mulf %35, %47 : vector<8x1xf32>
    %50 = arith.subf %48, %49 : vector<8x1xf32>
    %51 = vector.broadcast %47 : vector<8x1xf32> to vector<8x256xf32>
    %52 = arith.mulf %31, %51 : vector<8x256xf32>
    %53 = vector.broadcast %50 : vector<8x1xf32> to vector<8x256xf32>
    %54 = arith.addf %52, %53 : vector<8x256xf32>
    %55 = arith.addf %54, %0 : vector<8x256xf32>
    %c0_19 = arith.constant 0 : index
    %56 = memref.load %arg4[%c0_19] : memref<1xf32, #tpu.memory_space<smem>>
    %cst_20 = arith.constant 0.000000e+00 : f32
    %57 = vector.broadcast %cst_20 : f32 to vector<8x256xf32>
    %58 = arith.cmpf oge, %55, %57 : vector<8x256xf32>
    %59 = vector.broadcast %56 : f32 to vector<8x256xf32>
    %60 = arith.mulf %59, %55 : vector<8x256xf32>
    %61 = arith.select %58, %55, %60 : vector<8x256xi1>, vector<8x256xf32>
    %c0_21 = arith.constant 0 : index
    %c0_22 = arith.constant 0 : index
    %62 = vector.load %arg5[%c0_21, %c0_22] : memref<8x256xf32, #tpu.memory_space<vmem>>, vector<8x256xf32>
    tpu.vector_store %arg5[%c0_21, %c0_22], %61 {strides = array<i32>} : memref<8x256xf32, #tpu.memory_space<vmem>>, vector<8x256xf32>,
    return
  }
}

</mosaic_0001>

<llo_original>
// kernel: tpu_custom_call.1
$region0: #{tpu_custom_call.1}
  #allocation0 [shape = 'u32[]', space=smem, size = 0x4, offset = 0x4, fixed_abs, tag = 'smem constant byte address 0x4 - core index']
  #allocation1 [shape = 'u32[144,128]{1,0:T(1,128)}', space=vmem, size = 0x12000, scoped, tag = 'internal scratch']
  #allocation2 [shape = 'f32[1]{0:T(128)S(6)}', space=smem, size = 0x200, scoped, tag = 'scoped memory for tpu_custom_call.1']
  %s0 = inlined_call_operand.vmem [shape: f32[8,256], index: 0, kind: input, shape index: {}]
  %s1 = inlined_call_operand.vmem [shape: bf16[8,24], index: 1, kind: input, shape index: {}]
  %s2 = inlined_call_operand.vmem [shape: f32[8,1], index: 2, kind: input, shape index: {}]
  %s3 = inlined_call_operand.vmem [shape: f32[8,1], index: 3, kind: input, shape index: {}]
  %s4 = inlined_call_operand.<no memory space> [shape: f32[1], index: 4, kind: input, shape index: {}]
  %s5 = inlined_call_operand.hbm [shape: f32[8,256], index: 5, kind: output, shape index: {}]
  %s6 = sld [smem:[#allocation0]]
  $region30: #{tpu_custom_call.1} parent=0
    _
  %s8 = ssub.s32 1, %s6
  %s9 = scalar_select 0, %s8, %s6
  %10 = sst [smem:[#allocation2]] %s4
  $region1: #{tpu_custom_call.1} parent=0
    #allocation3 [shape = 'u8[8192]{0}', space=vmem, size = 0x2000, scoped, tag = 'output window, operand 0, single buffered']
    #allocation4 [shape = 's32[1]{0}', space=sflag, size = 0x4, scoped, tag = 'scoped memory for tpu_custom_call.1']
    %11 = vsyncpa [#allocation4], 0
    // Predicated region
    $region2: #{tpu_custom_call.1} parent=1 // pred_check
      _
    $region3: #{tpu_custom_call.1} parent=1 // pred_check_branch
      %13 = sbr.rel (0) target = $region5
    $region4: #{tpu_custom_call.1} parent=1 // pred_region
      _
    $region5: #{tpu_custom_call.1} parent=1 // pred_fallthru
      _
    // Predicated region
    $region6: #{tpu_custom_call.1} parent=1 // pred_check
      _
    $region7: #{tpu_custom_call.1} parent=1 // pred_check_branch
      %15 = sbr.rel (0) target = $region9
    $region8: #{tpu_custom_call.1} parent=1 // pred_region
      _
    $region9: #{tpu_custom_call.1} parent=1 // pred_fallthru
      _
    // Predicated region
    $region10: #{tpu_custom_call.1} parent=1 // pred_check
      _
    $region11: #{tpu_custom_call.1} parent=1 // pred_check_branch
      %17 = sbr.rel (0) target = $region13
    $region12: #{tpu_custom_call.1} parent=1 // pred_region
      _
    $region13: #{tpu_custom_call.1} parent=1 // pred_fallthru
      _
    // Predicated region
    $region14: #{tpu_custom_call.1} parent=1 // pred_check
      _
    $region15: #{tpu_custom_call.1} parent=1 // pred_check_branch
      %19 = sbr.rel (0) target = $region17
    $region16: #{tpu_custom_call.1} parent=1 // pred_region
      _
    $region17: #{tpu_custom_call.1} parent=1 // pred_fallthru
      _
    // Predicated region
    $region18: #{tpu_custom_call.1} parent=1 // pred_check
      _
    $region19: #{tpu_custom_call.1} parent=1 // pred_check_branch
      %21 = sbr.rel (0) target = $region21
    $region20: #{tpu_custom_call.1} parent=1 // pred_region
      _
    $region21: #{tpu_custom_call.1} parent=1 // pred_fallthru
      _
    %v23 = vld [vmem:[%s0] sm:$0xff]
    %v24 = vld [vmem:[%s0 + $0x8] sm:$0xff]
    %v25 = vlaneseq
    %v26 = vand.u32 %v25, 127
    %v27 = vadd.s32 %v26, 128
    %vm28 = vcmp.lt.s32.totalorder %v26, 0
    %v29 = vsub.s32 0, %v26
    %v30 = vsel %vm28, %v29, %v26
    %v31 = vshrl.u32 %v30, 7
    %v32 = vand.u32 %v30, 127
    %v33 = vsub.s32 0, %v32
    %v34 = vsel %vm28, %v33, %v32
    %vm35 = vcmp.lt.s32.totalorder %v27, 0
    %v36 = vsub.s32 0, %v27
    %v37 = vsel %vm35, %v36, %v27
    %v38 = vshrl.u32 %v37, 7
    %v39 = vand.u32 %v37, 127
    %v40 = vsub.s32 0, %v39
    %v41 = vsel %vm35, %v40, %v39
    %vm42 = vcmp.ne.s32.totalorder %v34, 0
    %vm43 = vcmp.ne.s32.totalorder %v41, 0
    %vm44 = vcmp.lt.s32.totalorder %v34, 0
    %vm45 = vcmp.lt.s32.totalorder %v41, 0
    %vm46 = vmand %vm44, %vm42
    %vm47 = vmand %vm45, %vm43
    %v48 = vadd.s32 %v34, 128
    %v49 = vadd.s32 %v41, 128
    %v50 = vsel %vm46, %v48, %v34
    %v51 = vsel %vm47, %v49, %v41
    %vm52 = vcmp.eq.s32.totalorder %v50, 0
    %vm53 = vcmp.eq.s32.totalorder %v51, 0
    %54 = vrot.lane.b32.xlu0 %v23, 1
    %v55 = vpop.permute.xlu0 %54
    %56 = vrot.lane.b32.xlu0 %v24, 1
    %v57 = vpop.permute.xlu0 %56
    %vm58 = vcmp.lt.s32.totalorder %v26, 1
    %v59 = vsel %vm58, %v55, %v57
    %v60 = vsel %vm58, %v57, %v55
    %v61 = vsel %vm52, 0.0, %v60
    %v62 = vsel %vm53, 0.0, %v59
    %vm63 = vcmp.eq.s32.totalorder %v50, 127
    %vm64 = vcmp.eq.s32.totalorder %v51, 127
    %65 = vrot.lane.b32.xlu0 %v23, 127
    %v66 = vpop.permute.xlu0 %65
    %67 = vrot.lane.b32.xlu0 %v24, 127
    %v68 = vpop.permute.xlu0 %67
    %vm69 = vcmp.lt.s32.totalorder %v26, 127
    %v70 = vsel %vm69, %v66, %v68
    %v71 = vsel %vm69, %v68, %v66
    %v72 = vsel %vm63, 0.0, %v70
    %v73 = vsel %vm64, 0.0, %v71
    %v74 = vpack.c.bf16 %v23, %v61
    %v75 = vpack.c.bf16 %v24, %v62
    %v76 = vpack.c.bf16 %v72, %v72
    %v77 = vpack.c.bf16 %v73, %v73
    %v78 = vld [vmem:[%s1] sm:$0xf]
    %vm79 = vcmask 195584
    %v81 = vsel %vm79, %v78, 0
    %vm83 = vcmask 1043456
    %v85 = vsel %vm83, %v76, 0
    %v88 = vsel %vm83, %v77, 0
    %90 = vmatprep.subr.bf16.mxu0 %v75
    %91 = vmatpush1.bf16.msra.mxu0 %v74
    %92 = vmatprep.subr.bf16.mxu0 %v88
    %93 = vmatpush1.bf16.msra.mxu0 %v85
    %94 = vmatprep.subr.bf16.mxu0 0
    %95 = vmatpush1.bf16.msra.mxu0 0
    %96 = vmatprep.subr.bf16.mxu0 0
    %97 = vmatpush1.bf16.msra.mxu0 0
    %98 = vmatprep.subr.bf16.mxu0 0
    %99 = vmatpush1.bf16.msra.mxu0 0
    %100 = vmatprep.subr.bf16.mxu0 0
    %101 = vmatpush1.bf16.msra.mxu0 0
    %102 = vmatprep.subr.bf16.mxu0 0
    %103 = vmatpush1.bf16.msra.mxu0 0
    %104 = vmatprep.subr.bf16.mxu0 0
    %105 = vmatpush1.bf16.msra.mxu0 0
    %106 = vmatprep.subr.bf16.mxu0 0
    %107 = vmatpush1.bf16.msra.mxu0 0
    %108 = vmatprep.subr.bf16.mxu0 0
    %109 = vmatpush1.bf16.msra.mxu0 0
    %110 = vmatprep.subr.bf16.mxu0 0
    %111 = vmatpush1.bf16.msra.mxu0 0
    %112 = vmatprep.subr.bf16.mxu0 0
    %113 = vmatpush1.bf16.msra.mxu0 0
    %114 = vmatprep.subr.bf16.mxu0 0
    %115 = vmatpush1.bf16.msra.mxu0 0
    %116 = vmatprep.subr.bf16.mxu0 0
    %117 = vmatpush1.bf16.msra.mxu0 0
    %118 = vmatprep.subr.bf16.mxu0 0
    %119 = vmatpush1.bf16.msra.mxu0 0
    %120 = vmatprep.subr.bf16.mxu0 0
    %121 = vmatpush1.bf16.msra.mxu0 0
    %122 = vmatprep.mubr.bf16.mxu0 0
    %123 = vmatmul.mubr.bf16.gmra.mrb[0].mxu0 %v81
    %v124 = vpop.f32.mrb[0].mxu0
    %v125 = vadd.f32 0.0, %v124
    %v126 = vpop.f32.mrb[0].mxu0
    %v127 = vadd.f32 0.0, %v126
    %v128 = vpop.f32.mrb[0].mxu0
    %v129 = vpop.f32.mrb[0].mxu0
    %130 = vdwg.mxu0
    %v131 = vadd.f32 %v125, %v127
    %132 = vadd.xlane.f32.xlu0 %v131
    %v133 = vpop.xlane.xlu0 %132
    %v134 = vmul.f32 %v133, 0.00390625
    %v135 = vsub.f32 %v125, %v134
    %v136 = vsub.f32 %v127, %v134
    %v137 = vmul.f32 %v135, %v135
    %v138 = vmul.f32 %v136, %v136
    %v139 = vadd.f32 %v137, %v138
    %140 = vadd.xlane.f32.xlu0 %v139
    %v141 = vpop.xlane.xlu0 %140
    %v142 = vmul.f32 %v141, 0.00390625
    %v143 = vld [vmem:[%s2] sm:$0xff]
    %v144 = vadd.f32 %v142, 1e-05
    %v145 = vrsqrt.pop %v144
    %v146 = vmul.f32 %v143, %v145
    %v147 = vld [vmem:[%s3] sm:$0xff]
    %v148 = vmul.f32 %v134, %v146
    %v149 = vsub.f32 %v147, %v148
    %151 = vset.pattern.permute.xlu0 0
    %152 = vperm.xlu0 %151, %v146
    %v153 = vpop.permute.xlu0 %152
    %v155 = vmul.f32 %v125, %v153
    %v156 = vmul.f32 %v127, %v153
    %158 = vset.pattern.permute.xlu0 0
    %159 = vperm.xlu0 %158, %v149
    %v160 = vpop.permute.xlu0 %159
    %v162 = vadd.f32 %v155, %v160
    %v163 = vadd.f32 %v156, %v160
    %v164 = vadd.f32 %v162, %v23
    %v165 = vadd.f32 %v163, %v24
    %s166 = sld [smem:[#allocation2]]
    %vm167 = vcmp.ge.f32.partialorder %v164, 0.0
    %vm168 = vcmp.ge.f32.partialorder %v165, 0.0
    %v169 = vstv %s166
    %v170 = vmul.f32 %v169, %v164
    %v171 = vmul.f32 %v169, %v165
    %v172 = vsel %vm167, %v164, %v170
    %v173 = vsel %vm168, %v165, %v171
    %174 = vst [vmem:[#allocation3] sm:$0xff] %v172
    %175 = vst [vmem:[#allocation3 + $0x8] sm:$0xff] %v173
    // Predicated region
    $region22: #{tpu_custom_call.1} parent=1 // pred_check
      _
    $region23: #{tpu_custom_call.1} parent=1 // pred_check_branch
      %177 = sbr.rel (0) target = $region25
    $region24: #{tpu_custom_call.1} parent=1 // pred_region
      %s179 = ssub.s32 256, 256
      %180 = vsyncadd [#allocation4], %s179
      %s182 = sshll.u32 [#allocation3], 4
      %s183 = int_to_ptr.vmem [resolvable:$true] %s182
      %185 = dma.vmem_to_hbm [thread:$0]  %s183, 256, %s5, [#allocation4]
    $region25: #{tpu_custom_call.1} parent=1 // pred_fallthru
      _
    // Predicated region
    $region26: #{tpu_custom_call.1} parent=1 // pred_check
      _
    $region27: #{tpu_custom_call.1} parent=1 // pred_check_branch
      %187 = sbr.rel (0) target = $region29
    $region28: #{tpu_custom_call.1} parent=1 // pred_region
      %188 = dma.done [#allocation4], 256
    $region29: #{tpu_custom_call.1} parent=1 // pred_fallthru
      _
    %189 = vsyncpa [#allocation4], 1

</llo_original>
